<compile_context>
chip_gen: v7x
topology: tpu7x:2x2x1
jax: 0.10.0
libtpu: 0.0.40
codegen_flags: <defaults>
</compile_context>

<pallas_src>
import jax
import jax.numpy as jnp
from jax.experimental import pallas as pl
from jax.experimental.pallas import tpu as pltpu


def _round_up(x, m):
    return ((x + m - 1) // m) * m


def nnlm_kernel(x_ref, w1_ref, b1_ref, w2_ref, w3_ref, b23_ref, out_ref):
    x = x_ref[...]                                      # (TB, Dp) bf16

    # fc1 + tanh: MXU matmul with f32 accumulation, f32 bias + tanh.
    h = jnp.tanh(
        jnp.dot(x, w1_ref[...], preferred_element_type=jnp.float32) + b1_ref[...]
    )                                                   # (TB, H) f32

    # fc3(x) + fc2(h) + (b2 + b3): two MXU dots with f32 accumulation.
    logits = (
        jnp.dot(x, w3_ref[...], preferred_element_type=jnp.float32)
        + jnp.dot(h.astype(jnp.bfloat16), w2_ref[...],
                  preferred_element_type=jnp.float32)
        + b23_ref[...]
    )                                                   # (TB, V) f32

    # softmax over the vocabulary (lane) axis.  Exact f32 divide: rows sum to
    # 1 to float32 rounding (the approx reciprocal broke that guarantee and
    # buys nothing here since the kernel is HBM-bound, not EUP/VALU-bound).
    m = jnp.max(logits, axis=-1, keepdims=True)
    e = jnp.exp(logits - m)
    out_ref[...] = e / jnp.sum(e, axis=-1, keepdims=True)


def nnlm_forward(tokens, emb_table, w1, b1, w2, b2, w3, b3, *, block_b=512):
    """tokens: (B, seq_len-1) int32.  Returns (B, dict_len) f32 softmax probs."""
    B, ctx = tokens.shape
    E = emb_table.shape[1]
    D = ctx * E
    H = w1.shape[1]
    V = w2.shape[1]

    # ---- row tiling -------------------------------------------------------
    # Large tiles (the kernel is HBM/per-step-overhead-bound), adapted down to
    # the actual batch, multiple of 16 for bf16 sublanes.  Keep >= 2 grid
    # steps when the batch allows so the "parallel" axis can shard across the
    # two TensorCores on v7x.
    TB = max(16, min(_round_up(block_b, 16), _round_up(B, 16)))
    if (B + TB - 1) // TB < 2 and TB >= 32:
        TB = _round_up(TB // 2, 16)
    Bp = _round_up(B, TB)
    nb = Bp // TB

    # ---- one-time operand prep (layout plumbing, outside the kernel) -------
    # Pad the contraction dim D to a multiple of 128 lanes (zero pad -> exact).
    Dp = _round_up(D, 128)
    w1p = jnp.zeros((Dp, H), jnp.float32).at[:D, :].set(w1).astype(jnp.bfloat16)
    w3p = jnp.zeros((Dp, V), jnp.float32).at[:D, :].set(w3).astype(jnp.bfloat16)
    w2b = w2.astype(jnp.bfloat16)
    b23 = (b2 + b3).astype(jnp.float32)                                 # (1, V)
    b1f = b1.astype(jnp.float32)                                        # (1, H)

    # Embedding gather + flatten (plain JAX glue; padding_idx=0 row is zeroed).
    # Gather directly in bf16 and fold both pads into the same producer so the
    # x_flat intermediate is materialized once, in bf16.
    # TODO(synk): fuse the gather into the kernel (scalar-prefetch tokens with
    # the bf16 table resident in VMEM) to remove this HBM round trip entirely.
    x_flat = jnp.take(emb_table.astype(jnp.bfloat16), tokens, axis=0).reshape(B, D)
    x_flat = jnp.pad(x_flat, ((0, Bp - B), (0, Dp - D)))

    const0 = lambda i: (0, 0)

    out = pl.pallas_call(
        nnlm_kernel,
        out_shape=jax.ShapeDtypeStruct((Bp, V), jnp.float32),
        grid_spec=pltpu.PrefetchScalarGridSpec(
            num_scalar_prefetch=0,
            grid=(nb,),
            in_specs=[
                pl.BlockSpec((TB, Dp), lambda i: (i, 0)),   # x rows (pipelined)
                pl.BlockSpec((Dp, H), const0),              # W1 (resident)
                pl.BlockSpec((1, H), const0),               # b1
                pl.BlockSpec((H, V), const0),               # W2 (resident)
                pl.BlockSpec((Dp, V), const0),              # W3 (resident)
                pl.BlockSpec((1, V), const0),               # b2 + b3
            ],
            out_specs=pl.BlockSpec((TB, V), lambda i: (i, 0)),
        ),
        compiler_params=pltpu.CompilerParams(
            dimension_semantics=("parallel",),
            vmem_limit_bytes=32 * 1024 * 1024,
        ),
    )(x_flat, w1p, b1f, w2b, w3p, b23)

    return out[:B]


if __name__ == "__main__":
    # Small shapes consistent with the module's forward.
    seq_len = 8            # module convention: context length is seq_len - 1
    embedding_size = 16
    hidden_size = 32
    dict_len = 128
    batch = 56             # deliberately not a multiple of the row tile

    ctx = seq_len - 1
    D = ctx * embedding_size

    key = jax.random.PRNGKey(0)
    k_emb, k_w1, k_b1, k_w2, k_b2, k_w3, k_b3, k_tok = jax.random.split(key, 8)

    # Deterministic parameter init (shapes from NNLM.__init__).
    emb_table = 0.1 * jax.random.normal(k_emb, (dict_len, embedding_size), jnp.float32)
    emb_table = emb_table.at[0].set(0.0)   # padding_idx=0

    # Stored as (in_features, out_features), i.e. transpose of torch Linear.weight.
    w1 = 0.1 * jax.random.normal(k_w1, (D, hidden_size), jnp.float32)
    b1 = 0.1 * jax.random.normal(k_b1, (1, hidden_size), jnp.float32)
    w2 = 0.1 * jax.random.normal(k_w2, (hidden_size, dict_len), jnp.float32)
    b2 = 0.1 * jax.random.normal(k_b2, (1, dict_len), jnp.float32)
    w3 = 0.1 * jax.random.normal(k_w3, (D, dict_len), jnp.float32)
    b3 = 0.1 * jax.random.normal(k_b3, (1, dict_len), jnp.float32)

    tokens = jax.random.randint(k_tok, (batch, ctx), 0, dict_len, jnp.int32)

    out = nnlm_forward(tokens, emb_table, w1, b1, w2, b2, w3, b3)
    out = jax.block_until_ready(out)

    # Reference in plain f32 JAX (module semantics).
    x_flat = jnp.take(emb_table, tokens, axis=0).reshape(batch, D)
    h_ref = jnp.tanh(x_flat @ w1 + b1)
    logits_ref = h_ref @ w2 + b2 + x_flat @ w3 + b3
    ref = jax.nn.softmax(logits_ref, axis=1)

    assert out.shape == (batch, dict_len)
    # bf16 MXU operands vs f32 reference: loose per-element tolerance, but the
    # exact-divide softmax keeps rows normalized to f32 rounding.
    max_err = float(jnp.max(jnp.abs(out - ref)))
    assert max_err < 2e-3, f"max abs err {max_err}"
    row_sum_err = float(jnp.max(jnp.abs(jnp.sum(out, axis=1) - 1.0)))
    assert row_sum_err < 1e-3, f"row sum err {row_sum_err}"

    print("KERNEL_OK")
</pallas_src>

<mosaic_0001>
module attributes {stable_mosaic.version = 11 : i64} {
  func.func @nnlm_kernel(%arg0: i32, %arg1: memref<32x128xbf16, #tpu.memory_space<vmem>>, %arg2: memref<128x32xbf16, #tpu.memory_space<vmem>>, %arg3: memref<1x32xf32, #tpu.memory_space<vmem>>, %arg4: memref<32x128xbf16, #tpu.memory_space<vmem>>, %arg5: memref<128x128xbf16, #tpu.memory_space<vmem>>, %arg6: memref<1x128xf32, #tpu.memory_space<vmem>>, %arg7: memref<32x128xf32, #tpu.memory_space<vmem>>) attributes {dimension_semantics = [#tpu.dimension_semantics<parallel>], iteration_bounds = array<i64: 2>, scalar_prefetch = 0 : i64, scratch_operands = 0 : i64, tpu.core_type = #tpu.core_type<tc>, window_params = [{transform_indices = @transform_0, window_bounds = array<i64: 32, 128>}, {pipeline_mode = #tpu.pipeline_mode<synchronous>, transform_indices = @transform_1, window_bounds = array<i64: 128, 32>}, {pipeline_mode = #tpu.pipeline_mode<synchronous>, transform_indices = @transform_2, window_bounds = array<i64: 1, 32>}, {pipeline_mode = #tpu.pipeline_mode<synchronous>, transform_indices = @transform_3, window_bounds = array<i64: 32, 128>}, {pipeline_mode = #tpu.pipeline_mode<synchronous>, transform_indices = @transform_4, window_bounds = array<i64: 128, 128>}, {pipeline_mode = #tpu.pipeline_mode<synchronous>, transform_indices = @transform_5, window_bounds = array<i64: 1, 128>}, {transform_indices = @transform_6, window_bounds = array<i64: 32, 128>}]} {
    %c0 = arith.constant 0 : index
    %c0_0 = arith.constant 0 : index
    %0 = vector.load %arg1[%c0, %c0_0] : memref<32x128xbf16, #tpu.memory_space<vmem>>, vector<32x128xbf16>
    %c0_1 = arith.constant 0 : index
    %c0_2 = arith.constant 0 : index
    %1 = vector.load %arg2[%c0_1, %c0_2] : memref<128x32xbf16, #tpu.memory_space<vmem>>, vector<128x32xbf16>
    %cst = arith.constant dense<0.000000e+00> : vector<32x32xf32>
    %2 = tpu.matmul %0, %1, %cst {dimension_numbers = #tpu.dot_dimension_numbers<[1], [0], [0], [1], [0, 0, 1, 1], [], []>} : vector<32x128xbf16>, vector<128x32xbf16>, vector<32x32xf32> -> vector<32x32xf32>
    %c0_3 = arith.constant 0 : index
    %c0_4 = arith.constant 0 : index
    %3 = vector.load %arg3[%c0_3, %c0_4] : memref<1x32xf32, #tpu.memory_space<vmem>>, vector<1x32xf32>
    %4 = vector.broadcast %3 : vector<1x32xf32> to vector<32x32xf32>
    %5 = arith.addf %2, %4 : vector<32x32xf32>
    %6 = math.tanh %5 : vector<32x32xf32>
    %c0_5 = arith.constant 0 : index
    %c0_6 = arith.constant 0 : index
    %7 = vector.load %arg5[%c0_5, %c0_6] : memref<128x128xbf16, #tpu.memory_space<vmem>>, vector<128x128xbf16>
    %cst_7 = arith.constant dense<0.000000e+00> : vector<32x128xf32>
    %8 = tpu.matmul %0, %7, %cst_7 {dimension_numbers = #tpu.dot_dimension_numbers<[1], [0], [0], [1], [0, 0, 1, 1], [], []>} : vector<32x128xbf16>, vector<128x128xbf16>, vector<32x128xf32> -> vector<32x128xf32>
    %9 = arith.truncf %6 : vector<32x32xf32> to vector<32x32xbf16>
    %c0_8 = arith.constant 0 : index
    %c0_9 = arith.constant 0 : index
    %10 = vector.load %arg4[%c0_8, %c0_9] : memref<32x128xbf16, #tpu.memory_space<vmem>>, vector<32x128xbf16>
    %cst_10 = arith.constant dense<0.000000e+00> : vector<32x128xf32>
    %11 = tpu.matmul %9, %10, %cst_10 {dimension_numbers = #tpu.dot_dimension_numbers<[1], [0], [0], [1], [0, 0, 1, 1], [], []>} : vector<32x32xbf16>, vector<32x128xbf16>, vector<32x128xf32> -> vector<32x128xf32>
    %12 = arith.addf %8, %11 : vector<32x128xf32>
    %c0_11 = arith.constant 0 : index
    %c0_12 = arith.constant 0 : index
    %13 = vector.load %arg6[%c0_11, %c0_12] : memref<1x128xf32, #tpu.memory_space<vmem>>, vector<1x128xf32>
    %14 = vector.broadcast %13 : vector<1x128xf32> to vector<32x128xf32>
    %15 = arith.addf %12, %14 : vector<32x128xf32>
    %cst_13 = arith.constant dense<0xFF800000> : vector<32xf32>
    %16 = vector.multi_reduction <maximumf>, %15, %cst_13 [1] : vector<32x128xf32> to vector<32xf32>
    %17 = vector.shape_cast %16 : vector<32xf32> to vector<32x1xf32>
    %18 = vector.broadcast %17 : vector<32x1xf32> to vector<32x128xf32>
    %19 = arith.subf %15, %18 : vector<32x128xf32>
    %20 = math.exp %19 : vector<32x128xf32>
    %cst_14 = arith.constant dense<0.000000e+00> : vector<32xf32>
    %21 = vector.multi_reduction <add>, %20, %cst_14 [1] : vector<32x128xf32> to vector<32xf32>
    %22 = vector.shape_cast %21 : vector<32xf32> to vector<32x1xf32>
    %23 = vector.broadcast %22 : vector<32x1xf32> to vector<32x128xf32>
    %24 = arith.divf %20, %23 : vector<32x128xf32>
    %c0_15 = arith.constant 0 : index
    %c0_16 = arith.constant 0 : index
    %25 = vector.load %arg7[%c0_15, %c0_16] : memref<32x128xf32, #tpu.memory_space<vmem>>, vector<32x128xf32>
    tpu.vector_store %arg7[%c0_15, %c0_16], %24 {strides = array<i32>} : memref<32x128xf32, #tpu.memory_space<vmem>>, vector<32x128xf32>,
    return
  }
  func.func @transform_0(%arg0: i32) -> (i32, i32) {
    %c0_i32 = arith.constant 0 : i32
    %c0_i32_0 = arith.constant 0 : i32
    return %arg0, %c0_i32 : i32, i32
  }
  func.func @transform_1(%arg0: i32) -> (i32, i32) {
    %c0_i32 = arith.constant 0 : i32
    %c0_i32_0 = arith.constant 0 : i32
    %c0_i32_1 = arith.constant 0 : i32
    return %c0_i32, %c0_i32_0 : i32, i32
  }
  func.func @transform_2(%arg0: i32) -> (i32, i32) {
    %c0_i32 = arith.constant 0 : i32
    %c0_i32_0 = arith.constant 0 : i32
    %c0_i32_1 = arith.constant 0 : i32
    return %c0_i32, %c0_i32_0 : i32, i32
  }
  func.func @transform_3(%arg0: i32) -> (i32, i32) {
    %c0_i32 = arith.constant 0 : i32
    %c0_i32_0 = arith.constant 0 : i32
    %c0_i32_1 = arith.constant 0 : i32
    return %c0_i32, %c0_i32_0 : i32, i32
  }
  func.func @transform_4(%arg0: i32) -> (i32, i32) {
    %c0_i32 = arith.constant 0 : i32
    %c0_i32_0 = arith.constant 0 : i32
    %c0_i32_1 = arith.constant 0 : i32
    return %c0_i32, %c0_i32_0 : i32, i32
  }
  func.func @transform_5(%arg0: i32) -> (i32, i32) {
    %c0_i32 = arith.constant 0 : i32
    %c0_i32_0 = arith.constant 0 : i32
    %c0_i32_1 = arith.constant 0 : i32
    return %c0_i32, %c0_i32_0 : i32, i32
  }
  func.func @transform_6(%arg0: i32) -> (i32, i32) {
    %c0_i32 = arith.constant 0 : i32
    %c0_i32_0 = arith.constant 0 : i32
    return %arg0, %c0_i32 : i32, i32
  }
}

</mosaic_0001>

<llo_original>
// kernel: tpu_custom_call.1
$region0: #{tpu_custom_call.1}
  #allocation0 [shape = 'u32[]', space=smem, size = 0x4, offset = 0x4, fixed_abs, tag = 'smem constant byte address 0x4 - core index']
  #allocation1 [shape = 'u32[144,128]{1,0:T(1,128)}', space=vmem, size = 0x12000, scoped, tag = 'internal scratch']
  %s0 = inlined_call_operand.hbm [shape: bf16[64,128], index: 0, kind: input, shape index: {}]
  %s1 = inlined_call_operand.vmem [shape: bf16[128,32], index: 1, kind: input, shape index: {}]
  %s2 = inlined_call_operand.vmem [shape: f32[1,32], index: 2, kind: input, shape index: {}]
  %s3 = inlined_call_operand.vmem [shape: bf16[32,128], index: 3, kind: input, shape index: {}]
  %s4 = inlined_call_operand.vmem [shape: bf16[128,128], index: 4, kind: input, shape index: {}]
  %s5 = inlined_call_operand.vmem [shape: f32[1,128], index: 5, kind: input, shape index: {}]
  %s6 = inlined_call_operand.hbm [shape: f32[64,128], index: 6, kind: output, shape index: {}]
  %s7 = sld [smem:[#allocation0]]
  $region61: #{tpu_custom_call.1} parent=0
    _
  %s9 = ssub.s32 1, %s7
  %s10 = scalar_select 0, %s9, %s7
  $region1: #{tpu_custom_call.1} parent=0
    #allocation2 [shape = 'u8[16384]{0}', space=vmem, size = 0x4000, scoped, tag = 'input window, operand 0']
    #allocation3 [shape = 's32[2]{0}', space=sflag, size = 0x8, scoped, tag = 'scoped memory for tpu_custom_call.1']
    #allocation4 [shape = 's32[2]{0}', space=sflag, size = 0x8, scoped, tag = 'scoped memory for tpu_custom_call.1']
    #allocation5 [shape = 'u8[32768]{0}', space=vmem, size = 0x8000, scoped, tag = 'output window, operand 0']
    %11 = vsyncpa [#allocation3], 0
    %s12 = scalar_lea.sflag [#allocation3], 1
    %13 = vsyncpa %s12, 0
    %14 = vsyncpa [#allocation4], 0
    %s15 = scalar_lea.sflag [#allocation4], 1
    %16 = vsyncpa %s15, 0
    loop: start=0, step=1, limit=4
    $region2: #{tpu_custom_call.1} parent=1 // loop_pre_header
      _
    $region3: #{tpu_custom_call.1} parent=1 // loop_header
      %s18 = sphi 0, %s22
      %p19 = scmp.ge.s32.totalorder %s18, 4
      %s28 = sphi 0, %s30
      %s31 = sphi 0, %s28
      %s32 = sphi 0, %s31
      %s48 = sphi 0, %s32
      %s52 = sphi 0, %s52
      %s54 = sphi 0, %s52
      %s55 = sphi 0, %s54
      %s69 = sphi 0, %s55
      %s73 = sphi 0, %s73
      %s75 = sphi 0, %s73
      %s76 = sphi 0, %s75
      %s90 = sphi 0, %s76
      %s94 = sphi 0, %s94
      %s96 = sphi 0, %s94
      %s97 = sphi 0, %s96
      %s111 = sphi 0, %s97
      %s115 = sphi 0, %s115
      %s117 = sphi 0, %s115
      %s118 = sphi 0, %s117
      %s132 = sphi 0, %s118
      %s136 = sphi 0, %s136
      %s138 = sphi 0, %s136
      %s139 = sphi 0, %s138
      %s153 = sphi 0, %s139
      %s159 = sphi 0, %s161
      %s162 = sphi 0, %s159
      %s163 = sphi 0, %s162
      %s179 = sphi 0, %s163
    $region4: #{tpu_custom_call.1} parent=1 // loop_header_branch
      %21 = sbr.rel (%p19) target = $region8
    $region5: #{tpu_custom_call.1} parent=1 // loop_body
      %s23 = ssub.s32 %s18, 1
      %s24 = ssub.s32 %s18, 2
      %s25 = sadd.s32 %s18, 1
      %s26 = ssub.s32 %s18, %s25
      %p27 = scmp.eq.s32.totalorder %s26, 0
      %s29 = sadd.s32 %s28, 1
      %s30 = scalar_select %p27, %s28, %s29
      %p33 = pneg %p27
      %p34 = scmp.eq.s32.totalorder %s18, 1
      %p35 = por %p33, %p34
      %p36 = scmp.ne.s32.totalorder %s28, %s31
      %p37 = scmp.eq.s32.totalorder %s18, 0
      %p38 = por %p36, %p37
      %p39 = scmp.ne.s32.totalorder %s28, %s31
      %p40 = scmp.eq.s32.totalorder %s23, 1
      %p41 = por %p39, %p40
      %p42 = scmp.ne.s32.totalorder %s31, %s32
      %p43 = scmp.eq.s32.totalorder %s23, 0
      %p44 = por %p42, %p43
      %p45 = scmp.ne.s32.totalorder %s31, %s32
      %p46 = scmp.eq.s32.totalorder %s24, 1
      %p47 = por %p45, %p46
      %p49 = scmp.ne.s32.totalorder %s32, %s48
      %p50 = scmp.eq.s32.totalorder %s24, 0
      %p51 = por %p49, %p50
      %s53 = sadd.s32 %s52, 1
      %p56 = scmp.eq.s32.totalorder %s18, 1
      %p57 = scmp.ne.s32.totalorder %s52, %s54
      %p58 = scmp.eq.s32.totalorder %s18, 0
      %p59 = por %p57, %p58
      %p60 = scmp.ne.s32.totalorder %s52, %s54
      %p61 = scmp.eq.s32.totalorder %s23, 1
      %p62 = por %p60, %p61
      %p63 = scmp.ne.s32.totalorder %s54, %s55
      %p64 = scmp.eq.s32.totalorder %s23, 0
      %p65 = por %p63, %p64
      %p66 = scmp.ne.s32.totalorder %s54, %s55
      %p67 = scmp.eq.s32.totalorder %s24, 1
      %p68 = por %p66, %p67
      %p70 = scmp.ne.s32.totalorder %s55, %s69
      %p71 = scmp.eq.s32.totalorder %s24, 0
      %p72 = por %p70, %p71
      %s74 = sadd.s32 %s73, 1
      %p77 = scmp.eq.s32.totalorder %s18, 1
      %p78 = scmp.ne.s32.totalorder %s73, %s75
      %p79 = scmp.eq.s32.totalorder %s18, 0
      %p80 = por %p78, %p79
      %p81 = scmp.ne.s32.totalorder %s73, %s75
      %p82 = scmp.eq.s32.totalorder %s23, 1
      %p83 = por %p81, %p82
      %p84 = scmp.ne.s32.totalorder %s75, %s76
      %p85 = scmp.eq.s32.totalorder %s23, 0
      %p86 = por %p84, %p85
      %p87 = scmp.ne.s32.totalorder %s75, %s76
      %p88 = scmp.eq.s32.totalorder %s24, 1
      %p89 = por %p87, %p88
      %p91 = scmp.ne.s32.totalorder %s76, %s90
      %p92 = scmp.eq.s32.totalorder %s24, 0
      %p93 = por %p91, %p92
      %s95 = sadd.s32 %s94, 1
      %p98 = scmp.eq.s32.totalorder %s18, 1
      %p99 = scmp.ne.s32.totalorder %s94, %s96
      %p100 = scmp.eq.s32.totalorder %s18, 0
      %p101 = por %p99, %p100
      %p102 = scmp.ne.s32.totalorder %s94, %s96
      %p103 = scmp.eq.s32.totalorder %s23, 1
      %p104 = por %p102, %p103
      %p105 = scmp.ne.s32.totalorder %s96, %s97
      %p106 = scmp.eq.s32.totalorder %s23, 0
      %p107 = por %p105, %p106
      %p108 = scmp.ne.s32.totalorder %s96, %s97
      %p109 = scmp.eq.s32.totalorder %s24, 1
      %p110 = por %p108, %p109
      %p112 = scmp.ne.s32.totalorder %s97, %s111
      %p113 = scmp.eq.s32.totalorder %s24, 0
      %p114 = por %p112, %p113
      %s116 = sadd.s32 %s115, 1
      %p119 = scmp.eq.s32.totalorder %s18, 1
      %p120 = scmp.ne.s32.totalorder %s115, %s117
      %p121 = scmp.eq.s32.totalorder %s18, 0
      %p122 = por %p120, %p121
      %p123 = scmp.ne.s32.totalorder %s115, %s117
      %p124 = scmp.eq.s32.totalorder %s23, 1
      %p125 = por %p123, %p124
      %p126 = scmp.ne.s32.totalorder %s117, %s118
      %p127 = scmp.eq.s32.totalorder %s23, 0
      %p128 = por %p126, %p127
      %p129 = scmp.ne.s32.totalorder %s117, %s118
      %p130 = scmp.eq.s32.totalorder %s24, 1
      %p131 = por %p129, %p130
      %p133 = scmp.ne.s32.totalorder %s118, %s132
      %p134 = scmp.eq.s32.totalorder %s24, 0
      %p135 = por %p133, %p134
      %s137 = sadd.s32 %s136, 1
      %p140 = scmp.eq.s32.totalorder %s18, 1
      %p141 = scmp.ne.s32.totalorder %s136, %s138
      %p142 = scmp.eq.s32.totalorder %s18, 0
      %p143 = por %p141, %p142
      %p144 = scmp.ne.s32.totalorder %s136, %s138
      %p145 = scmp.eq.s32.totalorder %s23, 1
      %p146 = por %p144, %p145
      %p147 = scmp.ne.s32.totalorder %s138, %s139
      %p148 = scmp.eq.s32.totalorder %s23, 0
      %p149 = por %p147, %p148
      %p150 = scmp.ne.s32.totalorder %s138, %s139
      %p151 = scmp.eq.s32.totalorder %s24, 1
      %p152 = por %p150, %p151
      %p154 = scmp.ne.s32.totalorder %s139, %s153
      %p155 = scmp.eq.s32.totalorder %s24, 0
      %p156 = por %p154, %p155
      %s157 = ssub.s32 %s18, %s25
      %p158 = scmp.eq.s32.totalorder %s157, 0
      %s160 = sadd.s32 %s159, 1
      %s161 = scalar_select %p158, %s159, %s160
      %p164 = pneg %p158
      %p165 = scmp.eq.s32.totalorder %s18, 1
      %p166 = por %p164, %p165
      %p167 = scmp.ne.s32.totalorder %s159, %s162
      %p168 = scmp.eq.s32.totalorder %s18, 0
      %p169 = por %p167, %p168
      %p170 = scmp.ne.s32.totalorder %s159, %s162
      %p171 = scmp.eq.s32.totalorder %s23, 1
      %p172 = por %p170, %p171
      %p173 = scmp.ne.s32.totalorder %s162, %s163
      %p174 = scmp.eq.s32.totalorder %s23, 0
      %p175 = por %p173, %p174
      %p176 = scmp.ne.s32.totalorder %s162, %s163
      %p177 = scmp.eq.s32.totalorder %s24, 1
      %p178 = por %p176, %p177
      %p180 = scmp.ne.s32.totalorder %s163, %s179
      %p181 = scmp.eq.s32.totalorder %s24, 0
      %p182 = por %p180, %p181
      %p183 = scmp.le.s32.totalorder 1, %s18
      %p184 = scmp.lt.s32.totalorder %s18, 3
      %p185 = pnand %p183, %p184
      %p186 = pneg %p185
      // Predicated region
      $region9: #{tpu_custom_call.1} parent=5 // pred_check
        _
      $region10: #{tpu_custom_call.1} parent=5 // pred_check_branch
        %188 = sbr.rel (%p185) target = $region12
      $region11: #{tpu_custom_call.1} parent=5 // pred_region
        %s189 = ssub.s32 %s18, 1
        // Predicated region
        $region13: #{tpu_custom_call.1} parent=11 // pred_check
          %p190 = pneg %p65
        $region14: #{tpu_custom_call.1} parent=11 // pred_check_branch
          %192 = sbr.rel (%p190) target = $region16
        $region15: #{tpu_custom_call.1} parent=11 // pred_region
          _
        $region16: #{tpu_custom_call.1} parent=11 // pred_fallthru
          _
        // Predicated region
        $region17: #{tpu_custom_call.1} parent=11 // pred_check
          %p193 = pneg %p86
        $region18: #{tpu_custom_call.1} parent=11 // pred_check_branch
          %195 = sbr.rel (%p193) target = $region20
        $region19: #{tpu_custom_call.1} parent=11 // pred_region
          _
        $region20: #{tpu_custom_call.1} parent=11 // pred_fallthru
          _
        // Predicated region
        $region21: #{tpu_custom_call.1} parent=11 // pred_check
          %p196 = pneg %p107
        $region22: #{tpu_custom_call.1} parent=11 // pred_check_branch
          %198 = sbr.rel (%p196) target = $region24
        $region23: #{tpu_custom_call.1} parent=11 // pred_region
          _
        $region24: #{tpu_custom_call.1} parent=11 // pred_fallthru
          _
        // Predicated region
        $region25: #{tpu_custom_call.1} parent=11 // pred_check
          %p199 = pneg %p128
        $region26: #{tpu_custom_call.1} parent=11 // pred_check_branch
          %201 = sbr.rel (%p199) target = $region28
        $region27: #{tpu_custom_call.1} parent=11 // pred_region
          _
        $region28: #{tpu_custom_call.1} parent=11 // pred_fallthru
          _
        // Predicated region
        $region29: #{tpu_custom_call.1} parent=11 // pred_check
          %p202 = pneg %p149
        $region30: #{tpu_custom_call.1} parent=11 // pred_check_branch
          %204 = sbr.rel (%p202) target = $region32
        $region31: #{tpu_custom_call.1} parent=11 // pred_region
          _
        $region32: #{tpu_custom_call.1} parent=11 // pred_fallthru
          _
      $region12: #{tpu_custom_call.1} parent=5 // pred_fallthru
        _
      %p205 = scmp.lt.s32.totalorder %s18, 2
      // Predicated region
      $region33: #{tpu_custom_call.1} parent=5 // pred_check
        %p206 = pneg %p205
      $region34: #{tpu_custom_call.1} parent=5 // pred_check_branch
        %208 = sbr.rel (%p206) target = $region36
      $region35: #{tpu_custom_call.1} parent=5 // pred_region
        // Predicated region
        $region37: #{tpu_custom_call.1} parent=35 // pred_check
          %p209 = pneg %p38
        $region38: #{tpu_custom_call.1} parent=35 // pred_check_branch
          %211 = sbr.rel (%p209) target = $region40
        $region39: #{tpu_custom_call.1} parent=35 // pred_region
          %s212 = sand.u32 %s28, 1
          %s213 = scalar_lea.sflag [#allocation3], %s212
          %s214 = sand.u32 %s28, 1
          %s215 = smul.addr %s214, 16
          %s216 = scalar_lea.vmem [#allocation2], %s215
          %s217 = smul.u32 4, %s18
          %s219 = ssub.s32 256, 256
          %220 = vsyncadd %s213, %s219
          %s221 = smul.addr %s217, 64
          %s222 = scalar_lea.hbm %s0, %s221
          %s223 = sshll.u32 %s216, 4
          %s224 = int_to_ptr.vmem [resolvable:$true] %s223
          %229 = dma.hbm_to_vmem [thread:$0]  %s222, 256, %s224, %s213, 64, 64, 4
        $region40: #{tpu_custom_call.1} parent=35 // pred_fallthru
          _
      $region36: #{tpu_custom_call.1} parent=5 // pred_fallthru
        _
      %p230 = scmp.le.s32.totalorder 1, %s18
      %p231 = scmp.lt.s32.totalorder %s18, 3
      %p232 = pnand %p230, %p231
      %p233 = pneg %p232
      // Predicated region
      $region41: #{tpu_custom_call.1} parent=5 // pred_check
        _
      $region42: #{tpu_custom_call.1} parent=5 // pred_check_branch
        %235 = sbr.rel (%p232) target = $region44
      $region43: #{tpu_custom_call.1} parent=5 // pred_region
        %s236 = ssub.s32 %s18, 1
        %s237 = sand.u32 %s31, 1
        %s238 = scalar_lea.sflag [#allocation3], %s237
        %s239 = sand.u32 %s31, 1
        %s240 = smul.addr %s239, 16
        %s241 = scalar_lea.vmem [#allocation2], %s240
        // Predicated region
        $region45: #{tpu_custom_call.1} parent=43 // pred_check
          %p242 = pneg %p44
        $region46: #{tpu_custom_call.1} parent=43 // pred_check_branch
          %244 = sbr.rel (%p242) target = $region48
        $region47: #{tpu_custom_call.1} parent=43 // pred_region
          %245 = dma.done %s238, 256
        $region48: #{tpu_custom_call.1} parent=43 // pred_fallthru
          _
        %s246 = sand.u32 %s31, 1
        %s247 = scalar_lea.sflag [#allocation3], %s246
        %s248 = sand.u32 %s31, 1
        %s249 = smul.addr %s248, 16
        %s250 = scalar_lea.vmem [#allocation2], %s249
        %p251 = pneg %p44
        %p252 = pneg %p41
        %p253 = pneg %p65
        %p254 = pneg %p62
        %p255 = pneg %p86
        %p256 = pneg %p83
        %p257 = pneg %p107
        %p258 = pneg %p104
        %p259 = pneg %p128
        %p260 = pneg %p125
        %p261 = pneg %p149
        %p262 = pneg %p146
        %p263 = pneg %p175
        %p264 = pneg %p172
        %s265 = sand.u32 %s162, 1
        %s266 = scalar_lea.sflag [#allocation4], %s265
        %s267 = sand.u32 %s162, 1
        %s268 = smul.addr %s267, 32
        %s269 = scalar_lea.vmem [#allocation5], %s268
        %s270 = smul.u32 4, %s23
        %s271 = smul.u32 4, %s23
        %v273 = vld [vmem:[%s241] sm:$0xf]
        %v274 = vld [vmem:[%s241 + $0x4] sm:$0xf]
        %v275 = vld [vmem:[%s241 + $0x8] sm:$0xf]
        %v276 = vld [vmem:[%s241 + $0xc] sm:$0xf]
        %v277 = vld [vmem:[%s1] sm:$0xf]
        %v278 = vld [vmem:[%s1 + $0x4] sm:$0xf]
        %v279 = vld [vmem:[%s1 + $0x8] sm:$0xf]
        %v280 = vld [vmem:[%s1 + $0xc] sm:$0xf]
        %v281 = vld [vmem:[%s1 + $0x10] sm:$0xf]
        %v282 = vld [vmem:[%s1 + $0x14] sm:$0xf]
        %v283 = vld [vmem:[%s1 + $0x18] sm:$0xf]
        %v284 = vld [vmem:[%s1 + $0x1c] sm:$0xf]
        %v285 = vld [vmem:[%s1 + $0x20] sm:$0xf]
        %v286 = vld [vmem:[%s1 + $0x24] sm:$0xf]
        %v287 = vld [vmem:[%s1 + $0x28] sm:$0xf]
        %v288 = vld [vmem:[%s1 + $0x2c] sm:$0xf]
        %v289 = vld [vmem:[%s1 + $0x30] sm:$0xf]
        %v290 = vld [vmem:[%s1 + $0x34] sm:$0xf]
        %v291 = vld [vmem:[%s1 + $0x38] sm:$0xf]
        %v292 = vld [vmem:[%s1 + $0x3c] sm:$0xf]
        %v293 = vld [vmem:[%s2] sm:$0x1]
        %v295 = vlaneseq
        %v296 = vshrl.u32 %v295, 7
        %v297 = vsub.s32 0, %v296
        %v298 = vrot.slane %v293, %v297
        %v304 = vunpack.c.l.b16 %v273
        %v305 = vunpack.c.l.b16 %v274
        %v306 = vunpack.c.l.b16 %v275
        %v307 = vunpack.c.l.b16 %v276
        %v308 = vpack.c.b16 %v305, %v304
        %v309 = vpack.c.b16 %v307, %v306
        %v328 = vunpack.c.l.b16 %v277
        %v329 = vunpack.c.l.b16 %v278
        %v330 = vunpack.c.l.b16 %v279
        %v331 = vunpack.c.l.b16 %v280
        %v332 = vunpack.c.l.b16 %v281
        %v333 = vunpack.c.l.b16 %v282
        %v334 = vunpack.c.l.b16 %v283
        %v335 = vunpack.c.l.b16 %v284
        %v336 = vunpack.c.l.b16 %v285
        %v337 = vunpack.c.l.b16 %v286
        %v338 = vunpack.c.l.b16 %v287
        %v339 = vunpack.c.l.b16 %v288
        %v340 = vunpack.c.l.b16 %v289
        %v341 = vunpack.c.l.b16 %v290
        %v342 = vunpack.c.l.b16 %v291
        %v343 = vunpack.c.l.b16 %v292
        %v344 = vpack.c.b16 %v329, %v328
        %v345 = vpack.c.b16 %v331, %v330
        %v346 = vpack.c.b16 %v333, %v332
        %v347 = vpack.c.b16 %v335, %v334
        %v348 = vpack.c.b16 %v337, %v336
        %v349 = vpack.c.b16 %v339, %v338
        %v350 = vpack.c.b16 %v341, %v340
        %v351 = vpack.c.b16 %v343, %v342
        %360 = vmatprep.subr.bf16.mxu0 0
        %361 = vmatpush1.bf16.msra.mxu0 %v344
        %362 = vmatprep.subr.bf16.mxu0 0
        %363 = vmatpush1.bf16.msra.mxu0 %v345
        %364 = vmatprep.subr.bf16.mxu0 0
        %365 = vmatpush1.bf16.msra.mxu0 %v346
        %366 = vmatprep.subr.bf16.mxu0 0
        %367 = vmatpush1.bf16.msra.mxu0 %v347
        %368 = vmatprep.subr.bf16.mxu0 0
        %369 = vmatpush1.bf16.msra.mxu0 %v348
        %370 = vmatprep.subr.bf16.mxu0 0
        %371 = vmatpush1.bf16.msra.mxu0 %v349
        %372 = vmatprep.subr.bf16.mxu0 0
        %373 = vmatpush1.bf16.msra.mxu0 %v350
        %374 = vmatprep.subr.bf16.mxu0 0
        %375 = vmatpush1.bf16.msra.mxu0 %v351
        %376 = vmatprep.subr.bf16.mxu0 0
        %377 = vmatpush1.bf16.msra.mxu0 0
        %378 = vmatprep.subr.bf16.mxu0 0
        %379 = vmatpush1.bf16.msra.mxu0 0
        %380 = vmatprep.subr.bf16.mxu0 0
        %381 = vmatpush1.bf16.msra.mxu0 0
        %382 = vmatprep.subr.bf16.mxu0 0
        %383 = vmatpush1.bf16.msra.mxu0 0
        %384 = vmatprep.subr.bf16.mxu0 0
        %385 = vmatpush1.bf16.msra.mxu0 0
        %386 = vmatprep.subr.bf16.mxu0 0
        %387 = vmatpush1.bf16.msra.mxu0 0
        %388 = vmatprep.subr.bf16.mxu0 0
        %389 = vmatpush1.bf16.msra.mxu0 0
        %390 = vmatprep.subr.bf16.mxu0 0
        %391 = vmatpush1.bf16.msra.mxu0 0
        %392 = vmatprep.mubr.bf16.mxu0 0
        %393 = vmatmul.mubr.bf16.gmra.mrb[0].mxu0 %v308
        %v394 = vpop.f32.mrb[0].mxu0
        %v395 = vadd.f32 %v298, %v394
        %v396 = vpop.f32.mrb[0].mxu0
        %v397 = vpop.f32.mrb[0].mxu0
        %v398 = vadd.f32 %v298, %v397
        %v399 = vpop.f32.mrb[0].mxu0
        %400 = vmatprep.mubr.bf16.mxu0 0
        %401 = vmatmul.mubr.bf16.gmra.mrb[0].mxu0 %v309
        %v402 = vpop.f32.mrb[0].mxu0
        %v403 = vadd.f32 %v298, %v402
        %v404 = vpop.f32.mrb[0].mxu0
        %v405 = vpop.f32.mrb[0].mxu0
        %v406 = vadd.f32 %v298, %v405
        %v407 = vpop.f32.mrb[0].mxu0
        %408 = vdwg.mxu0
        %v409 = vtanh.pop %v395
        %v410 = vtanh.pop %v398
        %v411 = vtanh.pop %v403
        %v412 = vtanh.pop %v406
        %v413 = vld [vmem:[%s4] sm:$0xf]
        %v414 = vld [vmem:[%s4 + $0x4] sm:$0xf]
        %v415 = vld [vmem:[%s4 + $0x8] sm:$0xf]
        %v416 = vld [vmem:[%s4 + $0xc] sm:$0xf]
        %v417 = vld [vmem:[%s4 + $0x10] sm:$0xf]
        %v418 = vld [vmem:[%s4 + $0x14] sm:$0xf]
        %v419 = vld [vmem:[%s4 + $0x18] sm:$0xf]
        %v420 = vld [vmem:[%s4 + $0x1c] sm:$0xf]
        %v421 = vld [vmem:[%s4 + $0x20] sm:$0xf]
        %v422 = vld [vmem:[%s4 + $0x24] sm:$0xf]
        %v423 = vld [vmem:[%s4 + $0x28] sm:$0xf]
        %v424 = vld [vmem:[%s4 + $0x2c] sm:$0xf]
        %v425 = vld [vmem:[%s4 + $0x30] sm:$0xf]
        %v426 = vld [vmem:[%s4 + $0x34] sm:$0xf]
        %v427 = vld [vmem:[%s4 + $0x38] sm:$0xf]
        %v428 = vld [vmem:[%s4 + $0x3c] sm:$0xf]
        %v429 = vpack.c.bf16 %v410, %v409
        %v430 = vpack.c.bf16 %v412, %v411
        %v431 = vld [vmem:[%s3] sm:$0xf]
        %v432 = vld [vmem:[%s3 + $0x4] sm:$0xf]
        %v433 = vld [vmem:[%s3 + $0x8] sm:$0xf]
        %v434 = vld [vmem:[%s3 + $0xc] sm:$0xf]
        %v439 = vunpack.c.l.b16 %v431
        %v440 = vunpack.c.l.b16 %v432
        %v441 = vunpack.c.l.b16 %v433
        %v442 = vunpack.c.l.b16 %v434
        %v443 = vpack.c.b16 %v440, %v439
        %v444 = vpack.c.b16 %v442, %v441
        %vm447 = vcmask 261120
        %v449 = vsel %vm447, %v429, 0
        %v452 = vsel %vm447, %v430, 0
        %454 = vmatprep.subr.bf16.mxu0 0
        %455 = vmatpush1.bf16.msra.mxu0 %v443
        %456 = vmatprep.subr.bf16.mxu0 0
        %457 = vmatpush1.bf16.msra.mxu0 %v444
        %458 = vmatprep.subr.bf16.mxu0 0
        %459 = vmatpush1.bf16.msra.mxu0 0
        %460 = vmatprep.subr.bf16.mxu0 0
        %461 = vmatpush1.bf16.msra.mxu0 0
        %462 = vmatprep.subr.bf16.mxu0 0
        %463 = vmatpush1.bf16.msra.mxu0 0
        %464 = vmatprep.subr.bf16.mxu0 0
        %465 = vmatpush1.bf16.msra.mxu0 0
        %466 = vmatprep.subr.bf16.mxu0 0
        %467 = vmatpush1.bf16.msra.mxu0 0
        %468 = vmatprep.subr.bf16.mxu0 0
        %469 = vmatpush1.bf16.msra.mxu0 0
        %470 = vmatprep.subr.bf16.mxu0 0
        %471 = vmatpush1.bf16.msra.mxu0 0
        %472 = vmatprep.subr.bf16.mxu0 0
        %473 = vmatpush1.bf16.msra.mxu0 0
        %474 = vmatprep.subr.bf16.mxu0 0
        %475 = vmatpush1.bf16.msra.mxu0 0
        %476 = vmatprep.subr.bf16.mxu0 0
        %477 = vmatpush1.bf16.msra.mxu0 0
        %478 = vmatprep.subr.bf16.mxu0 0
        %479 = vmatpush1.bf16.msra.mxu0 0
        %480 = vmatprep.subr.bf16.mxu0 0
        %481 = vmatpush1.bf16.msra.mxu0 0
        %482 = vmatprep.subr.bf16.mxu0 0
        %483 = vmatpush1.bf16.msra.mxu0 0
        %484 = vmatprep.subr.bf16.mxu0 0
        %485 = vmatpush1.bf16.msra.mxu0 0
        %486 = vmatprep.mubr.bf16.mxu0 0
        %487 = vmatmul.mubr.bf16.gmra.mrb[0].mxu0 %v449
        %v488 = vpop.f32.mrb[0].mxu0
        %v489 = vadd.f32 0.0, %v488
        %v490 = vpop.f32.mrb[0].mxu0
        %v491 = vpop.f32.mrb[0].mxu0
        %v492 = vadd.f32 0.0, %v491
        %v493 = vpop.f32.mrb[0].mxu0
        %494 = vmatprep.mubr.bf16.mxu0 0
        %495 = vmatmul.mubr.bf16.gmra.mrb[0].mxu0 %v452
        %v496 = vpop.f32.mrb[0].mxu0
        %v497 = vadd.f32 0.0, %v496
        %v498 = vpop.f32.mrb[0].mxu0
        %v499 = vpop.f32.mrb[0].mxu0
        %v500 = vadd.f32 0.0, %v499
        %v501 = vpop.f32.mrb[0].mxu0
        %502 = vdwg.mxu0
        %v519 = vunpack.c.l.b16 %v413
        %v520 = vunpack.c.l.b16 %v414
        %v521 = vunpack.c.l.b16 %v415
        %v522 = vunpack.c.l.b16 %v416
        %v523 = vunpack.c.l.b16 %v417
        %v524 = vunpack.c.l.b16 %v418
        %v525 = vunpack.c.l.b16 %v419
        %v526 = vunpack.c.l.b16 %v420
        %v527 = vunpack.c.l.b16 %v421
        %v528 = vunpack.c.l.b16 %v422
        %v529 = vunpack.c.l.b16 %v423
        %v530 = vunpack.c.l.b16 %v424
        %v531 = vunpack.c.l.b16 %v425
        %v532 = vunpack.c.l.b16 %v426
        %v533 = vunpack.c.l.b16 %v427
        %v534 = vunpack.c.l.b16 %v428
        %v535 = vpack.c.b16 %v520, %v519
        %v536 = vpack.c.b16 %v522, %v521
        %v537 = vpack.c.b16 %v524, %v523
        %v538 = vpack.c.b16 %v526, %v525
        %v539 = vpack.c.b16 %v528, %v527
        %v540 = vpack.c.b16 %v530, %v529
        %v541 = vpack.c.b16 %v532, %v531
        %v542 = vpack.c.b16 %v534, %v533
        %551 = vmatprep.subr.bf16.mxu0 0
        %552 = vmatpush1.bf16.msra.mxu0 %v535
        %553 = vmatprep.subr.bf16.mxu0 0
        %554 = vmatpush1.bf16.msra.mxu0 %v536
        %555 = vmatprep.subr.bf16.mxu0 0
        %556 = vmatpush1.bf16.msra.mxu0 %v537
        %557 = vmatprep.subr.bf16.mxu0 0
        %558 = vmatpush1.bf16.msra.mxu0 %v538
        %559 = vmatprep.subr.bf16.mxu0 0
        %560 = vmatpush1.bf16.msra.mxu0 %v539
        %561 = vmatprep.subr.bf16.mxu0 0
        %562 = vmatpush1.bf16.msra.mxu0 %v540
        %563 = vmatprep.subr.bf16.mxu0 0
        %564 = vmatpush1.bf16.msra.mxu0 %v541
        %565 = vmatprep.subr.bf16.mxu0 0
        %566 = vmatpush1.bf16.msra.mxu0 %v542
        %567 = vmatprep.subr.bf16.mxu0 0
        %568 = vmatpush1.bf16.msra.mxu0 0
        %569 = vmatprep.subr.bf16.mxu0 0
        %570 = vmatpush1.bf16.msra.mxu0 0
        %571 = vmatprep.subr.bf16.mxu0 0
        %572 = vmatpush1.bf16.msra.mxu0 0
        %573 = vmatprep.subr.bf16.mxu0 0
        %574 = vmatpush1.bf16.msra.mxu0 0
        %575 = vmatprep.subr.bf16.mxu0 0
        %576 = vmatpush1.bf16.msra.mxu0 0
        %577 = vmatprep.subr.bf16.mxu0 0
        %578 = vmatpush1.bf16.msra.mxu0 0
        %579 = vmatprep.subr.bf16.mxu0 0
        %580 = vmatpush1.bf16.msra.mxu0 0
        %581 = vmatprep.subr.bf16.mxu0 0
        %582 = vmatpush1.bf16.msra.mxu0 0
        %583 = vmatprep.mubr.bf16.mxu0 0
        %584 = vmatmul.mubr.bf16.gmra.mrb[0].mxu0 %v308
        %v585 = vpop.f32.mrb[0].mxu0
        %v586 = vadd.f32 %v489, %v585
        %v587 = vpop.f32.mrb[0].mxu0
        %v588 = vpop.f32.mrb[0].mxu0
        %v589 = vadd.f32 %v492, %v588
        %v590 = vpop.f32.mrb[0].mxu0
        %591 = vmatprep.mubr.bf16.mxu0 0
        %592 = vmatmul.mubr.bf16.gmra.mrb[0].mxu0 %v309
        %v593 = vpop.f32.mrb[0].mxu0
        %v594 = vadd.f32 %v497, %v593
        %v595 = vpop.f32.mrb[0].mxu0
        %v596 = vpop.f32.mrb[0].mxu0
        %v597 = vadd.f32 %v500, %v596
        %v598 = vpop.f32.mrb[0].mxu0
        %599 = vdwg.mxu0
        %v600 = vld [vmem:[%s5] sm:$0x1]
        %v602 = vlaneseq
        %v603 = vshrl.u32 %v602, 7
        %v604 = vsub.s32 0, %v603
        %v605 = vrot.slane %v600, %v604
        %v607 = vadd.f32 %v586, %v605
        %v608 = vadd.f32 %v589, %v605
        %v609 = vadd.f32 %v594, %v605
        %v610 = vadd.f32 %v597, %v605
        %611 = vmax.xlane.f32.xlu0 %v607
        %v612 = vpop.xlane.xlu0 %611
        %613 = vmax.xlane.f32.xlu0 %v608
        %v614 = vpop.xlane.xlu0 %613
        %615 = vmax.xlane.f32.xlu0 %v609
        %v616 = vpop.xlane.xlu0 %615
        %617 = vmax.xlane.f32.xlu0 %v610
        %v618 = vpop.xlane.xlu0 %617
        %v619 = vsub.f32 %v607, %v612
        %v620 = vsub.f32 %v608, %v614
        %v621 = vsub.f32 %v609, %v616
        %v622 = vsub.f32 %v610, %v618
        %v623 = vmul.f32 %v619, 1.442695
        %v624 = vpow.pop %v623
        %v625 = vmul.f32 %v620, 1.442695
        %v626 = vpow.pop %v625
        %v627 = vmul.f32 %v621, 1.442695
        %v628 = vpow.pop %v627
        %v629 = vmul.f32 %v622, 1.442695
        %v630 = vpow.pop %v629
        %631 = vadd.xlane.f32.xlu0 %v624
        %v632 = vpop.xlane.xlu0 %631
        %633 = vadd.xlane.f32.xlu0 %v626
        %v634 = vpop.xlane.xlu0 %633
        %635 = vadd.xlane.f32.xlu0 %v628
        %v636 = vpop.xlane.xlu0 %635
        %637 = vadd.xlane.f32.xlu0 %v630
        %v638 = vpop.xlane.xlu0 %637
        %v639 = vrcp.pop %v632
        %v640 = vmul.f32 %v624, %v639
        %v641 = vrcp.pop %v634
        %v642 = vmul.f32 %v626, %v641
        %v643 = vrcp.pop %v636
        %v644 = vmul.f32 %v628, %v643
        %v645 = vrcp.pop %v638
        %v646 = vmul.f32 %v630, %v645
        %647 = vst [vmem:[%s269] sm:$0xff] %v640
        %648 = vst [vmem:[%s269 + $0x8] sm:$0xff] %v642
        %649 = vst [vmem:[%s269 + $0x10] sm:$0xff] %v644
        %650 = vst [vmem:[%s269 + $0x18] sm:$0xff] %v646
        %s651 = sand.u32 %s162, 1
        %s652 = scalar_lea.sflag [#allocation4], %s651
        %s653 = sand.u32 %s162, 1
        %s654 = smul.addr %s653, 32
        %s655 = scalar_lea.vmem [#allocation5], %s654
        // Predicated region
        $region49: #{tpu_custom_call.1} parent=43 // pred_check
          %p656 = pneg %p172
        $region50: #{tpu_custom_call.1} parent=43 // pred_check_branch
          %658 = sbr.rel (%p656) target = $region52
        $region51: #{tpu_custom_call.1} parent=43 // pred_region
          %s659 = smul.u32 4, %s23
          %s661 = ssub.s32 512, 512
          %662 = vsyncadd %s652, %s661
          %s663 = smul.addr %s659, 128
          %s664 = scalar_lea.hbm %s6, %s663
          %s665 = sshll.u32 %s655, 4
          %s666 = int_to_ptr.vmem [resolvable:$true] %s665
          %671 = dma.vmem_to_hbm [thread:$0]  %s666, 512, %s664, %s652, 128, 128, 8
        $region52: #{tpu_custom_call.1} parent=43 // pred_fallthru
          _
      $region44: #{tpu_custom_call.1} parent=5 // pred_fallthru
        _
      %p672 = scmp.le.s32.totalorder 2, %s18
      // Predicated region
      $region53: #{tpu_custom_call.1} parent=5 // pred_check
        %p673 = pneg %p672
      $region54: #{tpu_custom_call.1} parent=5 // pred_check_branch
        %675 = sbr.rel (%p673) target = $region56
      $region55: #{tpu_custom_call.1} parent=5 // pred_region
        %s676 = ssub.s32 %s18, 2
        // Predicated region
        $region57: #{tpu_custom_call.1} parent=55 // pred_check
          %p677 = pneg %p178
        $region58: #{tpu_custom_call.1} parent=55 // pred_check_branch
          %679 = sbr.rel (%p677) target = $region60
        $region59: #{tpu_custom_call.1} parent=55 // pred_region
          %s680 = sand.u32 %s163, 1
          %s681 = scalar_lea.sflag [#allocation4], %s680
          %s682 = sand.u32 %s163, 1
          %s683 = smul.addr %s682, 32
          %s684 = scalar_lea.vmem [#allocation5], %s683
          %685 = dma.done %s681, 512
        $region60: #{tpu_custom_call.1} parent=55 // pred_fallthru
          _
      $region56: #{tpu_custom_call.1} parent=5 // pred_fallthru
        _
    $region6: #{tpu_custom_call.1} parent=1 // loop_footer
      %s22 = sadd.s32 1, %s18
    $region7: #{tpu_custom_call.1} parent=1 // loop_footer_branch
      %17 = sbr.rel target = $region3
    $region8: #{tpu_custom_call.1} parent=1 // loop_exit
      _
    %686 = vsyncpa [#allocation3], 1
    %s687 = scalar_lea.sflag [#allocation3], 1
    %688 = vsyncpa %s687, 1
    %689 = vsyncpa [#allocation4], 1
    %s690 = scalar_lea.sflag [#allocation4], 1
    %691 = vsyncpa %s690, 1

</llo_original>
